<compile_context>
chip_gen: v5e
topology: v5e:2x2
jax: 0.10.0
libtpu: 0.0.40
codegen_flags: <defaults>
</compile_context>

<pallas_src>
import functools

import jax
import jax.numpy as jnp
from jax.experimental import pallas as pl
from jax.experimental.pallas import tpu as pltpu


def _ceil_div(a, b):
    return -(-a // b)


def _round_up(a, b):
    return _ceil_div(a, b) * b


def _f1_kernel(threshold, preds_ref, targets_ref, mask_ref,
               tp_out_ref, pos_out_ref, tp_acc, pos_acc):
    i = pl.program_id(1)  # reduction ("arbitrary") axis

    @pl.when(i == 0)
    def _init():
        tp_acc[...] = jnp.zeros_like(tp_acc)
        pos_acc[...] = jnp.zeros_like(pos_acc)

    # Widen inside the kernel (inputs arrive in their native / narrow dtypes).
    p = preds_ref[...].astype(jnp.float32)
    t = targets_ref[...].astype(jnp.float32)
    valid = mask_ref[...] != 0

    pred_pos = jnp.logical_and(p >= jnp.float32(threshold), valid).astype(jnp.float32)
    tgt_pos = jnp.logical_and(t > jnp.float32(0.5), valid).astype(jnp.float32)

    # Pure VPU adds each step; no cross-lane reductions until the epilogue.
    tp_acc[...] += pred_pos * tgt_pos          # TP contributions per cell
    pos_acc[...] += pred_pos + tgt_pos         # (TP+FP) + (TP+FN) = 2TP+FP+FN

    @pl.when(i == pl.num_programs(1) - 1)
    def _finalize():
        tp_tot = jnp.sum(tp_acc[...])
        pos_tot = jnp.sum(pos_acc[...])
        tp_out_ref[...] = jnp.full(tp_out_ref.shape, tp_tot, jnp.float32)
        pos_out_ref[...] = jnp.full(pos_out_ref.shape, pos_tot, jnp.float32)


def f1_binary_pallas(preds, targets, mask, *, threshold=0.5,
                     lane=512, tile_rows=512, num_splits=2):
    """Binary micro F1 over preds/targets with a boolean ignore mask."""
    assert preds.shape == targets.shape == mask.shape
    n = int(preds.size)

    preds_f = preds.reshape(-1)                         # keep native dtype
    targets_f = targets.reshape(-1)                     # keep native dtype
    mask_f = mask.reshape(-1).astype(jnp.int8)          # 1 byte / element

    # Lane-dense layout: rows of width `lane`, rows a multiple of 8.
    rows_min = max(1, _ceil_div(n, lane))
    rows_aligned = _round_up(rows_min, 8)
    if rows_aligned <= tile_rows:
        # Single block == full array along the row axis; any multiple of 8 is ok.
        tile_rows_eff = rows_aligned
        row_blocks = 1
    else:
        # Multiple blocks: round tile rows to a multiple of 32 so narrow-dtype
        # (int8 mask) blocks satisfy native sublane tiling.
        tile_rows_eff = _round_up(min(tile_rows, rows_aligned), 32)
        row_blocks = _ceil_div(rows_aligned, tile_rows_eff)

    splits = num_splits if row_blocks >= num_splits else 1   # v7x: 2 TCs
    steps = _ceil_div(row_blocks, splits)
    total_rows = splits * steps * tile_rows_eff
    pad = total_rows * lane - n
    if pad:
        # Padded positions carry mask=0 => never counted.
        preds_f = jnp.pad(preds_f, (0, pad))
        targets_f = jnp.pad(targets_f, (0, pad))
        mask_f = jnp.pad(mask_f, (0, pad))

    preds2 = preds_f.reshape(total_rows, lane)
    targets2 = targets_f.reshape(total_rows, lane)
    mask2 = mask_f.reshape(total_rows, lane)

    kernel = functools.partial(_f1_kernel, float(threshold))
    in_block = lambda c, i: (c * steps + i, 0)
    out_block = lambda c, i: (c, 0, 0)

    tp_out, pos_out = pl.pallas_call(
        kernel,
        out_shape=(
            jax.ShapeDtypeStruct((splits, 8, 128), jnp.float32),
            jax.ShapeDtypeStruct((splits, 8, 128), jnp.float32),
        ),
        grid=(splits, steps),
        in_specs=[
            pl.BlockSpec((tile_rows_eff, lane), in_block),   # preds
            pl.BlockSpec((tile_rows_eff, lane), in_block),   # targets
            pl.BlockSpec((tile_rows_eff, lane), in_block),   # mask (int8)
        ],
        out_specs=(
            pl.BlockSpec((1, 8, 128), out_block),            # partial TP
            pl.BlockSpec((1, 8, 128), out_block),            # partial 2TP+FP+FN
        ),
        scratch_shapes=[
            pltpu.VMEM((tile_rows_eff, lane), jnp.float32),  # TP accumulator
            pltpu.VMEM((tile_rows_eff, lane), jnp.float32),  # POS accumulator
        ],
        compiler_params=pltpu.CompilerParams(
            dimension_semantics=("parallel", "arbitrary"),
        ),
    )(preds2, targets2, mask2)

    # Combine per-split partial counts (tiny) and form the final scalar F1.
    tp_total = jnp.sum(tp_out[:, 0, 0])
    pos_total = jnp.sum(pos_out[:, 0, 0])         # == 2*TP + FP + FN
    denom = jnp.maximum(pos_total, jnp.float32(1.0))
    return jnp.where(pos_total > 0.0, 2.0 * tp_total / denom, jnp.float32(0.0))


class F1:
    """JAX/Pallas port of the PyTorch F1 metric module (binary task)."""

    def __init__(self, task="binary", threshold=0.5):
        assert task == "binary"  # TODO(synk): multilabel path not translated
        self.task = task
        self.threshold = threshold

    def __call__(self, preds, targets, *, mask=None, sample_weights=None):
        if mask is None:
            mask = jnp.ones(targets.shape, dtype=jnp.int8)
        # sample_weights intentionally unused, matching the reference forward().
        return f1_binary_pallas(preds, targets, mask, threshold=self.threshold)


def _f1_reference(preds, targets, mask, threshold):
    pred_pos = preds >= threshold
    tgt_pos = targets > 0.5
    valid = mask
    tp = jnp.sum((valid & pred_pos & tgt_pos).astype(jnp.float32))
    fp = jnp.sum((valid & pred_pos & ~tgt_pos).astype(jnp.float32))
    fn = jnp.sum((valid & ~pred_pos & tgt_pos).astype(jnp.float32))
    denom = 2.0 * tp + fp + fn
    return jnp.where(denom > 0, 2.0 * tp / denom, 0.0)


if __name__ == "__main__":
    key = jax.random.PRNGKey(0)
    threshold = 0.5
    metric = F1(task="binary", threshold=threshold)

    # Small shape consistent with the module's [B, T] signature.
    k_p, k_t, k_m = jax.random.split(key, 3)
    B, T = 2, 256
    preds = jax.random.uniform(k_p, (B, T), dtype=jnp.float32)            # probabilities
    targets = jax.random.bernoulli(k_t, 0.5, (B, T)).astype(jnp.float32)  # {0., 1.}
    mask = jax.random.bernoulli(k_m, 0.8, (B, T))                         # bool

    f1_val = jax.block_until_ready(metric(preds, targets, mask=mask))
    ref = _f1_reference(preds, targets, mask, threshold)
    assert jnp.allclose(f1_val, ref, atol=1e-6), (f1_val, ref)

    # Larger case exercising the multi-block / two-split (parallel) path.
    k_p2, k_t2, k_m2 = jax.random.split(jax.random.PRNGKey(1), 3)
    B2, T2 = 8, 65536
    preds2 = jax.random.uniform(k_p2, (B2, T2), dtype=jnp.float32)
    targets2 = jax.random.bernoulli(k_t2, 0.3, (B2, T2)).astype(jnp.float32)
    mask2 = jax.random.bernoulli(k_m2, 0.9, (B2, T2))

    f1_val2 = jax.block_until_ready(metric(preds2, targets2, mask=mask2))
    ref2 = _f1_reference(preds2, targets2, mask2, threshold)
    assert jnp.allclose(f1_val2, ref2, atol=1e-5), (f1_val2, ref2)

    print("KERNEL_OK")
</pallas_src>

<mosaic_0001>
module attributes {stable_mosaic.version = 11 : i64} {
  func.func @_f1_kernel(%arg0: i32, %arg1: i32, %arg2: memref<8x512xf32, #tpu.memory_space<vmem>>, %arg3: memref<8x512xf32, #tpu.memory_space<vmem>>, %arg4: memref<8x512xi8, #tpu.memory_space<vmem>>, %arg5: memref<1x8x128xf32, #tpu.memory_space<vmem>>, %arg6: memref<1x8x128xf32, #tpu.memory_space<vmem>>, %arg7: memref<8x512xf32, #tpu.memory_space<vmem>>, %arg8: memref<8x512xf32, #tpu.memory_space<vmem>>) attributes {dimension_semantics = [#tpu.dimension_semantics<parallel>, #tpu.dimension_semantics<arbitrary>], iteration_bounds = array<i64: 1, 1>, scalar_prefetch = 0 : i64, scratch_operands = 2 : i64, tpu.core_type = #tpu.core_type<tc>, window_params = [{transform_indices = @transform_0, window_bounds = array<i64: 8, 512>}, {transform_indices = @transform_1, window_bounds = array<i64: 8, 512>}, {transform_indices = @transform_2, window_bounds = array<i64: 8, 512>}, {transform_indices = @transform_3, window_bounds = array<i64: 1, 8, 128>}, {transform_indices = @transform_4, window_bounds = array<i64: 1, 8, 128>}]} {
    %c0_i32 = arith.constant 0 : i32
    %0 = arith.cmpi eq, %arg1, %c0_i32 : i32
    %1 = arith.extui %0 : i1 to i32
    %c0_i32_0 = arith.constant 0 : i32
    %2 = arith.cmpi ne, %1, %c0_i32_0 : i32
    scf.if %2 {
      %cst_17 = arith.constant 0.000000e+00 : f32
      %29 = vector.broadcast %cst_17 : f32 to vector<8x512xf32>
      %c0_18 = arith.constant 0 : index
      %c0_19 = arith.constant 0 : index
      %30 = vector.load %arg7[%c0_18, %c0_19] : memref<8x512xf32, #tpu.memory_space<vmem>>, vector<8x512xf32>
      tpu.vector_store %arg7[%c0_18, %c0_19], %29 {strides = array<i32>} : memref<8x512xf32, #tpu.memory_space<vmem>>, vector<8x512xf32>,
      %cst_20 = arith.constant 0.000000e+00 : f32
      %31 = vector.broadcast %cst_20 : f32 to vector<8x512xf32>
      %c0_21 = arith.constant 0 : index
      %c0_22 = arith.constant 0 : index
      %32 = vector.load %arg8[%c0_21, %c0_22] : memref<8x512xf32, #tpu.memory_space<vmem>>, vector<8x512xf32>
      tpu.vector_store %arg8[%c0_21, %c0_22], %31 {strides = array<i32>} : memref<8x512xf32, #tpu.memory_space<vmem>>, vector<8x512xf32>,
    } else {
    }
    %c0 = arith.constant 0 : index
    %c0_1 = arith.constant 0 : index
    %3 = vector.load %arg2[%c0, %c0_1] : memref<8x512xf32, #tpu.memory_space<vmem>>, vector<8x512xf32>
    %c0_2 = arith.constant 0 : index
    %c0_3 = arith.constant 0 : index
    %4 = vector.load %arg3[%c0_2, %c0_3] : memref<8x512xf32, #tpu.memory_space<vmem>>, vector<8x512xf32>
    %c0_4 = arith.constant 0 : index
    %c0_5 = arith.constant 0 : index
    %5 = vector.load %arg4[%c0_4, %c0_5] : memref<8x512xi8, #tpu.memory_space<vmem>>, vector<8x512xi8>
    %c0_i8 = arith.constant 0 : i8
    %6 = vector.broadcast %c0_i8 : i8 to vector<8x512xi8>
    %7 = arith.cmpi ne, %5, %6 : vector<8x512xi8>
    %cst = arith.constant 5.000000e-01 : f32
    %8 = vector.broadcast %cst : f32 to vector<8x512xf32>
    %9 = arith.cmpf oge, %3, %8 : vector<8x512xf32>
    %10 = arith.andi %9, %7 : vector<8x512xi1>
    %11 = arith.extui %10 : vector<8x512xi1> to vector<8x512xi32>
    %12 = arith.sitofp %11 : vector<8x512xi32> to vector<8x512xf32>
    %cst_6 = arith.constant 5.000000e-01 : f32
    %13 = vector.broadcast %cst_6 : f32 to vector<8x512xf32>
    %14 = arith.cmpf ogt, %4, %13 : vector<8x512xf32>
    %15 = arith.andi %14, %7 : vector<8x512xi1>
    %16 = arith.extui %15 : vector<8x512xi1> to vector<8x512xi32>
    %17 = arith.sitofp %16 : vector<8x512xi32> to vector<8x512xf32>
    %c0_7 = arith.constant 0 : index
    %c0_8 = arith.constant 0 : index
    %18 = vector.load %arg7[%c0_7, %c0_8] : memref<8x512xf32, #tpu.memory_space<vmem>>, vector<8x512xf32>
    %19 = arith.mulf %12, %17 : vector<8x512xf32>
    %20 = arith.addf %18, %19 : vector<8x512xf32>
    %c0_9 = arith.constant 0 : index
    %c0_10 = arith.constant 0 : index
    %21 = vector.load %arg7[%c0_9, %c0_10] : memref<8x512xf32, #tpu.memory_space<vmem>>, vector<8x512xf32>
    tpu.vector_store %arg7[%c0_9, %c0_10], %20 {strides = array<i32>} : memref<8x512xf32, #tpu.memory_space<vmem>>, vector<8x512xf32>,
    %c0_11 = arith.constant 0 : index
    %c0_12 = arith.constant 0 : index
    %22 = vector.load %arg8[%c0_11, %c0_12] : memref<8x512xf32, #tpu.memory_space<vmem>>, vector<8x512xf32>
    %23 = arith.addf %12, %17 : vector<8x512xf32>
    %24 = arith.addf %22, %23 : vector<8x512xf32>
    %c0_13 = arith.constant 0 : index
    %c0_14 = arith.constant 0 : index
    %25 = vector.load %arg8[%c0_13, %c0_14] : memref<8x512xf32, #tpu.memory_space<vmem>>, vector<8x512xf32>
    tpu.vector_store %arg8[%c0_13, %c0_14], %24 {strides = array<i32>} : memref<8x512xf32, #tpu.memory_space<vmem>>, vector<8x512xf32>,
    %c0_i32_15 = arith.constant 0 : i32
    %26 = arith.cmpi eq, %arg1, %c0_i32_15 : i32
    %27 = arith.extui %26 : i1 to i32
    %c0_i32_16 = arith.constant 0 : i32
    %28 = arith.cmpi ne, %27, %c0_i32_16 : i32
    scf.if %28 {
      %c0_17 = arith.constant 0 : index
      %c0_18 = arith.constant 0 : index
      %29 = vector.load %arg7[%c0_17, %c0_18] : memref<8x512xf32, #tpu.memory_space<vmem>>, vector<8x512xf32>
      %30 = vector.shape_cast %29 : vector<8x512xf32> to vector<1x8x512xf32>
      %cst_19 = arith.constant dense<0.000000e+00> : vector<1xf32>
      %31 = vector.multi_reduction <add>, %30, %cst_19 [1, 2] : vector<1x8x512xf32> to vector<1xf32>
      %32 = vector.shape_cast %31 : vector<1xf32> to vector<1x1x1xf32>
      %33 = vector.extract %32[0, 0, 0] : f32 from vector<1x1x1xf32>
      %c0_20 = arith.constant 0 : index
      %c0_21 = arith.constant 0 : index
      %34 = vector.load %arg8[%c0_20, %c0_21] : memref<8x512xf32, #tpu.memory_space<vmem>>, vector<8x512xf32>
      %35 = vector.shape_cast %34 : vector<8x512xf32> to vector<1x8x512xf32>
      %cst_22 = arith.constant dense<0.000000e+00> : vector<1xf32>
      %36 = vector.multi_reduction <add>, %35, %cst_22 [1, 2] : vector<1x8x512xf32> to vector<1xf32>
      %37 = vector.shape_cast %36 : vector<1xf32> to vector<1x1x1xf32>
      %38 = vector.extract %37[0, 0, 0] : f32 from vector<1x1x1xf32>
      %39 = vector.broadcast %33 : f32 to vector<1x8x128xf32>
      %c0_23 = arith.constant 0 : index
      %c0_24 = arith.constant 0 : index
      %c0_25 = arith.constant 0 : index
      %40 = vector.load %arg5[%c0_23, %c0_24, %c0_25] : memref<1x8x128xf32, #tpu.memory_space<vmem>>, vector<1x8x128xf32>
      tpu.vector_store %arg5[%c0_23, %c0_24, %c0_25], %39 {strides = array<i32>} : memref<1x8x128xf32, #tpu.memory_space<vmem>>, vector<1x8x128xf32>,
      %41 = vector.broadcast %38 : f32 to vector<1x8x128xf32>
      %c0_26 = arith.constant 0 : index
      %c0_27 = arith.constant 0 : index
      %c0_28 = arith.constant 0 : index
      %42 = vector.load %arg6[%c0_26, %c0_27, %c0_28] : memref<1x8x128xf32, #tpu.memory_space<vmem>>, vector<1x8x128xf32>
      tpu.vector_store %arg6[%c0_26, %c0_27, %c0_28], %41 {strides = array<i32>} : memref<1x8x128xf32, #tpu.memory_space<vmem>>, vector<1x8x128xf32>,
    } else {
    }
    return
  }
  func.func @transform_0(%arg0: i32, %arg1: i32) -> (i32, i32) {
    %c1_i32 = arith.constant 1 : i32
    %0 = arith.muli %arg0, %c1_i32 : i32
    %1 = arith.addi %0, %arg1 : i32
    %c0_i32 = arith.constant 0 : i32
    %c0_i32_0 = arith.constant 0 : i32
    return %1, %c0_i32 : i32, i32
  }
  func.func @transform_1(%arg0: i32, %arg1: i32) -> (i32, i32) {
    %c1_i32 = arith.constant 1 : i32
    %0 = arith.muli %arg0, %c1_i32 : i32
    %1 = arith.addi %0, %arg1 : i32
    %c0_i32 = arith.constant 0 : i32
    %c0_i32_0 = arith.constant 0 : i32
    return %1, %c0_i32 : i32, i32
  }
  func.func @transform_2(%arg0: i32, %arg1: i32) -> (i32, i32) {
    %c1_i32 = arith.constant 1 : i32
    %0 = arith.muli %arg0, %c1_i32 : i32
    %1 = arith.addi %0, %arg1 : i32
    %c0_i32 = arith.constant 0 : i32
    %c0_i32_0 = arith.constant 0 : i32
    return %1, %c0_i32 : i32, i32
  }
  func.func @transform_3(%arg0: i32, %arg1: i32) -> (i32, i32, i32) {
    %c0_i32 = arith.constant 0 : i32
    %c0_i32_0 = arith.constant 0 : i32
    %c0_i32_1 = arith.constant 0 : i32
    return %arg0, %c0_i32, %c0_i32_0 : i32, i32, i32
  }
  func.func @transform_4(%arg0: i32, %arg1: i32) -> (i32, i32, i32) {
    %c0_i32 = arith.constant 0 : i32
    %c0_i32_0 = arith.constant 0 : i32
    %c0_i32_1 = arith.constant 0 : i32
    return %arg0, %c0_i32, %c0_i32_0 : i32, i32, i32
  }
}

</mosaic_0001>

<llo_original>
// kernel: tpu_custom_call.1
$region0: #{tpu_custom_call.1}
  #allocation0 [shape = 'u32[]', space=smem, size = 0x4, offset = 0x4, fixed_abs, tag = 'smem constant byte address 0x4 - core index']
  #allocation1 [shape = 'u32[72,128]{1,0:T(1,128)}', space=vmem, size = 0x9000, scoped, tag = 'internal scratch']
  #allocation2 [shape = 'f32[8,512]{1,0:T(8,128)}', space=vmem, size = 0x4000, scoped, tag = 'scratch operand']
  #allocation3 [shape = 'f32[8,512]{1,0:T(8,128)}', space=vmem, size = 0x4000, scoped, tag = 'scratch operand']
  %s0 = inlined_call_operand.hbm [shape: f32[8,512], index: 0, kind: input, shape index: {}]
  %s1 = inlined_call_operand.hbm [shape: f32[8,512], index: 1, kind: input, shape index: {}]
  %s2 = inlined_call_operand.hbm [shape: s8[8,512], index: 2, kind: input, shape index: {}]
  %s3 = inlined_call_operand.hbm [shape: f32[1,8,128], index: 3, kind: output, shape index: {0}]
  %s4 = inlined_call_operand.hbm [shape: f32[1,8,128], index: 4, kind: output, shape index: {1}]
  %5 = xla_tuple %s3, %s4
  %s6 = sld [smem:[#allocation0]]
  $region50: #{tpu_custom_call.1} parent=0
    _
  %s8 = ssub.s32 1, %s6
  %s9 = scalar_select 0, %s8, %s6
  $region1: #{tpu_custom_call.1} parent=0
    #allocation4 [shape = 'u8[16384]{0}', space=vmem, size = 0x4000, scoped, tag = 'input window, operand 0, single buffered']
    #allocation5 [shape = 's32[1]{0}', space=sflag, size = 0x4, scoped, tag = 'scoped memory for tpu_custom_call.1']
    #allocation6 [shape = 's32[1]{0}', space=sflag, size = 0x4, scoped, tag = 'scoped memory for tpu_custom_call.1']
    #allocation7 [shape = 'u8[16384]{0}', space=vmem, size = 0x4000, scoped, tag = 'input window, operand 1, single buffered']
    #allocation8 [shape = 's32[1]{0}', space=sflag, size = 0x4, scoped, tag = 'scoped memory for tpu_custom_call.1']
    #allocation9 [shape = 'u8[4096]{0}', space=vmem, size = 0x1000, scoped, tag = 'input window, operand 2, single buffered']
    #allocation10 [shape = 'u8[4096]{0}', space=vmem, size = 0x1000, scoped, tag = 'output window, operand 0, single buffered']
    #allocation11 [shape = 'u8[4096]{0}', space=vmem, size = 0x1000, scoped, tag = 'output window, operand 1, single buffered']
    #allocation12 [shape = 's32[1]{0}', space=sflag, size = 0x4, scoped, tag = 'scoped memory for tpu_custom_call.1']
    %10 = vsyncpa [#allocation5], 0
    %11 = vsyncpa [#allocation8], 0
    %12 = vsyncpa [#allocation6], 0
    %13 = vsyncpa [#allocation12], 0
    // Predicated region
    $region2: #{tpu_custom_call.1} parent=1 // pred_check
      _
    $region3: #{tpu_custom_call.1} parent=1 // pred_check_branch
      %15 = sbr.rel (0) target = $region5
    $region4: #{tpu_custom_call.1} parent=1 // pred_region
      %s16 = sadd.s32 0, 0
      %18 = vsyncadd [#allocation5], 0
      %s19 = smul.addr %s16, 4
      %s20 = smul.addr %s19, 8
      %s21 = scalar_lea.hbm %s0, %s20
      %s23 = sshll.u32 %s21, 4
      %s24 = int_to_ptr.hbm [resolvable:$true] %s23
      %s25 = sshll.u32 [#allocation4], 4
      %s26 = int_to_ptr.vmem [resolvable:$true] %s25
      %28 = dma.hbm_to_vmem [thread:$0]  %s24, 512, %s26, [#allocation5]
    $region5: #{tpu_custom_call.1} parent=1 // pred_fallthru
      _
    // Predicated region
    $region6: #{tpu_custom_call.1} parent=1 // pred_check
      _
    $region7: #{tpu_custom_call.1} parent=1 // pred_check_branch
      %30 = sbr.rel (0) target = $region9
    $region8: #{tpu_custom_call.1} parent=1 // pred_region
      %s31 = sadd.s32 0, 0
      %33 = vsyncadd [#allocation8], 0
      %s34 = smul.addr %s31, 4
      %s35 = smul.addr %s34, 8
      %s36 = scalar_lea.hbm %s1, %s35
      %s38 = sshll.u32 %s36, 4
      %s39 = int_to_ptr.hbm [resolvable:$true] %s38
      %s40 = sshll.u32 [#allocation7], 4
      %s41 = int_to_ptr.vmem [resolvable:$true] %s40
      %43 = dma.hbm_to_vmem [thread:$0]  %s39, 512, %s41, [#allocation8]
    $region9: #{tpu_custom_call.1} parent=1 // pred_fallthru
      _
    // Predicated region
    $region10: #{tpu_custom_call.1} parent=1 // pred_check
      _
    $region11: #{tpu_custom_call.1} parent=1 // pred_check_branch
      %45 = sbr.rel (0) target = $region13
    $region12: #{tpu_custom_call.1} parent=1 // pred_region
      %s46 = sadd.s32 0, 0
      %48 = vsyncadd [#allocation8], 0
      %s49 = smul.addr %s46, 4
      %s50 = smul.addr %s49, 2
      %s51 = scalar_lea.hbm %s2, %s50
      %s53 = sshll.u32 %s51, 4
      %s54 = int_to_ptr.hbm [resolvable:$true] %s53
      %s55 = sshll.u32 [#allocation9], 4
      %s56 = int_to_ptr.vmem [resolvable:$true] %s55
      %58 = dma.hbm_to_vmem [thread:$0]  %s54, 128, %s56, [#allocation8]
    $region13: #{tpu_custom_call.1} parent=1 // pred_fallthru
      _
    // Predicated region
    $region14: #{tpu_custom_call.1} parent=1 // pred_check
      _
    $region15: #{tpu_custom_call.1} parent=1 // pred_check_branch
      %60 = sbr.rel (0) target = $region17
    $region16: #{tpu_custom_call.1} parent=1 // pred_region
      %62 = dma.done [#allocation5], 512
    $region17: #{tpu_custom_call.1} parent=1 // pred_fallthru
      _
    // Predicated region
    $region18: #{tpu_custom_call.1} parent=1 // pred_check
      _
    $region19: #{tpu_custom_call.1} parent=1 // pred_check_branch
      %64 = sbr.rel (0) target = $region21
    $region20: #{tpu_custom_call.1} parent=1 // pred_region
      %66 = dma.done [#allocation8], 512
    $region21: #{tpu_custom_call.1} parent=1 // pred_fallthru
      _
    // Predicated region
    $region22: #{tpu_custom_call.1} parent=1 // pred_check
      _
    $region23: #{tpu_custom_call.1} parent=1 // pred_check_branch
      %68 = sbr.rel (0) target = $region25
    $region24: #{tpu_custom_call.1} parent=1 // pred_region
      %70 = dma.done [#allocation8], 128
    $region25: #{tpu_custom_call.1} parent=1 // pred_fallthru
      _
    %s71 = sadd.s32 0, 0
    %s72 = sadd.s32 0, 0
    %s73 = sadd.s32 0, 0
    %p76 = scmp.eq.s32.totalorder 0, 0
    // Predicated region
    $region26: #{tpu_custom_call.1} parent=1 // pred_check
      %p77 = pneg %p76
    $region27: #{tpu_custom_call.1} parent=1 // pred_check_branch
      %79 = sbr.rel (%p77) target = $region29
    $region28: #{tpu_custom_call.1} parent=1 // pred_region
      %80 = vst [vmem:[#allocation2] sm:$0xff] 0.0
      %81 = vst [vmem:[#allocation2 + $0x8] sm:$0xff] 0.0
      %82 = vst [vmem:[#allocation2 + $0x10] sm:$0xff] 0.0
      %83 = vst [vmem:[#allocation2 + $0x18] sm:$0xff] 0.0
      %84 = vst [vmem:[#allocation3] sm:$0xff] 0.0
      %85 = vst [vmem:[#allocation3 + $0x8] sm:$0xff] 0.0
      %86 = vst [vmem:[#allocation3 + $0x10] sm:$0xff] 0.0
      %87 = vst [vmem:[#allocation3 + $0x18] sm:$0xff] 0.0
    $region29: #{tpu_custom_call.1} parent=1 // pred_fallthru
      _
    %v88 = vld [vmem:[#allocation4] sm:$0xff]
    %v89 = vld [vmem:[#allocation4 + $0x8] sm:$0xff]
    %v90 = vld [vmem:[#allocation4 + $0x10] sm:$0xff]
    %v91 = vld [vmem:[#allocation4 + $0x18] sm:$0xff]
    %v92 = vld [vmem:[#allocation7] sm:$0xff]
    %v93 = vld [vmem:[#allocation7 + $0x8] sm:$0xff]
    %v94 = vld [vmem:[#allocation7 + $0x10] sm:$0xff]
    %v95 = vld [vmem:[#allocation7 + $0x18] sm:$0xff]
    %v96 = vld [vmem:[#allocation9] sm:$0xff]
    %vm97 = vnez %v96
    %vm98 = vcmp.ge.f32.partialorder %v88, 0.5
    %vm99 = vcmp.ge.f32.partialorder %v89, 0.5
    %vm100 = vcmp.ge.f32.partialorder %v90, 0.5
    %vm101 = vcmp.ge.f32.partialorder %v91, 0.5
    %v102 = vsel %vm97, 16843009, 0
    %v103 = vunpack.c.0.s8 %v102
    %v104 = vunpack.c.1.s8 %v102
    %v105 = vunpack.c.2.s8 %v102
    %v106 = vunpack.c.3.s8 %v102
    %vm107 = vcmp.ne.s32.totalorder %v103, 0
    %vm108 = vcmp.ne.s32.totalorder %v104, 0
    %vm109 = vcmp.ne.s32.totalorder %v105, 0
    %vm110 = vcmp.ne.s32.totalorder %v106, 0
    %vm111 = vmand %vm98, %vm107
    %vm112 = vmand %vm99, %vm108
    %vm113 = vmand %vm100, %vm109
    %vm114 = vmand %vm101, %vm110
    %v115 = vsel %vm111, 1, 0
    %v116 = vsel %vm112, 1, 0
    %v117 = vsel %vm113, 1, 0
    %v118 = vsel %vm114, 1, 0
    %v119 = vcvt.s32.f32 %v115
    %v120 = vcvt.s32.f32 %v116
    %v121 = vcvt.s32.f32 %v117
    %v122 = vcvt.s32.f32 %v118
    %vm123 = vcmp.gt.f32.partialorder %v92, 0.5
    %vm124 = vcmp.gt.f32.partialorder %v93, 0.5
    %vm125 = vcmp.gt.f32.partialorder %v94, 0.5
    %vm126 = vcmp.gt.f32.partialorder %v95, 0.5
    %vm127 = vmand %vm123, %vm107
    %vm128 = vmand %vm124, %vm108
    %vm129 = vmand %vm125, %vm109
    %vm130 = vmand %vm126, %vm110
    %v131 = vsel %vm127, 1, 0
    %v132 = vsel %vm128, 1, 0
    %v133 = vsel %vm129, 1, 0
    %v134 = vsel %vm130, 1, 0
    %v135 = vcvt.s32.f32 %v131
    %v136 = vcvt.s32.f32 %v132
    %v137 = vcvt.s32.f32 %v133
    %v138 = vcvt.s32.f32 %v134
    %v139 = vld [vmem:[#allocation2] sm:$0xff]
    %v140 = vld [vmem:[#allocation2 + $0x8] sm:$0xff]
    %v141 = vld [vmem:[#allocation2 + $0x10] sm:$0xff]
    %v142 = vld [vmem:[#allocation2 + $0x18] sm:$0xff]
    %v143 = vmul.f32 %v119, %v135
    %v144 = vmul.f32 %v120, %v136
    %v145 = vmul.f32 %v121, %v137
    %v146 = vmul.f32 %v122, %v138
    %v147 = vadd.f32 %v139, %v143
    %v148 = vadd.f32 %v140, %v144
    %v149 = vadd.f32 %v141, %v145
    %v150 = vadd.f32 %v142, %v146
    %151 = vst [vmem:[#allocation2] sm:$0xff] %v147
    %152 = vst [vmem:[#allocation2 + $0x8] sm:$0xff] %v148
    %153 = vst [vmem:[#allocation2 + $0x10] sm:$0xff] %v149
    %154 = vst [vmem:[#allocation2 + $0x18] sm:$0xff] %v150
    %v155 = vld [vmem:[#allocation3] sm:$0xff]
    %v156 = vld [vmem:[#allocation3 + $0x8] sm:$0xff]
    %v157 = vld [vmem:[#allocation3 + $0x10] sm:$0xff]
    %v158 = vld [vmem:[#allocation3 + $0x18] sm:$0xff]
    %v159 = vadd.f32 %v119, %v135
    %v160 = vadd.f32 %v120, %v136
    %v161 = vadd.f32 %v121, %v137
    %v162 = vadd.f32 %v122, %v138
    %v163 = vadd.f32 %v155, %v159
    %v164 = vadd.f32 %v156, %v160
    %v165 = vadd.f32 %v157, %v161
    %v166 = vadd.f32 %v158, %v162
    %167 = vst [vmem:[#allocation3] sm:$0xff] %v163
    %168 = vst [vmem:[#allocation3 + $0x8] sm:$0xff] %v164
    %169 = vst [vmem:[#allocation3 + $0x10] sm:$0xff] %v165
    %170 = vst [vmem:[#allocation3 + $0x18] sm:$0xff] %v166
    // Predicated region
    $region30: #{tpu_custom_call.1} parent=1 // pred_check
      %p171 = pneg %p76
    $region31: #{tpu_custom_call.1} parent=1 // pred_check_branch
      %173 = sbr.rel (%p171) target = $region33
    $region32: #{tpu_custom_call.1} parent=1 // pred_region
      %v174 = vld [vmem:[#allocation2] sm:$0xff]
      %v175 = vld [vmem:[#allocation2 + $0x8] sm:$0xff]
      %v176 = vld [vmem:[#allocation2 + $0x10] sm:$0xff]
      %v177 = vld [vmem:[#allocation2 + $0x18] sm:$0xff]
      %v178 = vadd.f32 %v174, %v175
      %v179 = vadd.f32 %v178, %v176
      %v180 = vadd.f32 %v179, %v177
      %181 = vadd.xlane.f32.xlu0 %v180
      %v182 = vpop.xlane.xlu0 %181
      %v183 = vrot.slane %v182, 4
      %v184 = vadd.f32 %v182, %v183
      %v185 = vrot.slane %v184, 2
      %v186 = vadd.f32 %v184, %v185
      %v187 = vrot.slane %v186, 1
      %v188 = vadd.f32 %v186, %v187
      %s189 = vtos %v188
      %v190 = vld [vmem:[#allocation3] sm:$0xff]
      %v191 = vld [vmem:[#allocation3 + $0x8] sm:$0xff]
      %v192 = vld [vmem:[#allocation3 + $0x10] sm:$0xff]
      %v193 = vld [vmem:[#allocation3 + $0x18] sm:$0xff]
      %v194 = vadd.f32 %v190, %v191
      %v195 = vadd.f32 %v194, %v192
      %v196 = vadd.f32 %v195, %v193
      %197 = vadd.xlane.f32.xlu0 %v196
      %v198 = vpop.xlane.xlu0 %197
      %v199 = vrot.slane %v198, 4
      %v200 = vadd.f32 %v198, %v199
      %v201 = vrot.slane %v200, 2
      %v202 = vadd.f32 %v200, %v201
      %v203 = vrot.slane %v202, 1
      %v204 = vadd.f32 %v202, %v203
      %s205 = vtos %v204
      %v206 = vstv %s189
      %207 = vst [vmem:[#allocation10] sm:$0xff] %v206
      %v208 = vstv %s205
      %209 = vst [vmem:[#allocation11] sm:$0xff] %v208
    $region33: #{tpu_custom_call.1} parent=1 // pred_fallthru
      _
    // Predicated region
    $region34: #{tpu_custom_call.1} parent=1 // pred_check
      _
    $region35: #{tpu_custom_call.1} parent=1 // pred_check_branch
      %211 = sbr.rel (0) target = $region37
    $region36: #{tpu_custom_call.1} parent=1 // pred_region
      %213 = vsyncadd [#allocation6], 0
      %s215 = sshll.u32 [#allocation10], 4
      %s216 = int_to_ptr.vmem [resolvable:$true] %s215
      %s217 = sshll.u32 %s3, 4
      %s218 = int_to_ptr.hbm [resolvable:$true] %s217
      %220 = dma.vmem_to_hbm [thread:$0]  %s216, 128, %s218, [#allocation6]
    $region37: #{tpu_custom_call.1} parent=1 // pred_fallthru
      _
    // Predicated region
    $region38: #{tpu_custom_call.1} parent=1 // pred_check
      _
    $region39: #{tpu_custom_call.1} parent=1 // pred_check_branch
      %222 = sbr.rel (0) target = $region41
    $region40: #{tpu_custom_call.1} parent=1 // pred_region
      %224 = vsyncadd [#allocation12], 0
      %s226 = sshll.u32 [#allocation11], 4
      %s227 = int_to_ptr.vmem [resolvable:$true] %s226
      %s228 = sshll.u32 %s4, 4
      %s229 = int_to_ptr.hbm [resolvable:$true] %s228
      %231 = dma.vmem_to_hbm [thread:$0]  %s227, 128, %s229, [#allocation12]
    $region41: #{tpu_custom_call.1} parent=1 // pred_fallthru
      _
    // Predicated region
    $region42: #{tpu_custom_call.1} parent=1 // pred_check
      _
    $region43: #{tpu_custom_call.1} parent=1 // pred_check_branch
      %233 = sbr.rel (0) target = $region45
    $region44: #{tpu_custom_call.1} parent=1 // pred_region
      %235 = dma.done [#allocation6], 128
    $region45: #{tpu_custom_call.1} parent=1 // pred_fallthru
      _
    // Predicated region
    $region46: #{tpu_custom_call.1} parent=1 // pred_check
      _
    $region47: #{tpu_custom_call.1} parent=1 // pred_check_branch
      %237 = sbr.rel (0) target = $region49
    $region48: #{tpu_custom_call.1} parent=1 // pred_region
      %239 = dma.done [#allocation12], 128
    $region49: #{tpu_custom_call.1} parent=1 // pred_fallthru
      _
    %240 = vsyncpa [#allocation5], 1
    %241 = vsyncpa [#allocation8], 1
    %242 = vsyncpa [#allocation6], 1
    %243 = vsyncpa [#allocation12], 1

</llo_original>
